<compile_context>
chip_gen: v7x
topology: tpu7x:2x2x1
jax: 0.10.0
libtpu: 0.0.40
codegen_flags: <defaults>
</compile_context>

<pallas_src>
import functools

import jax
import jax.numpy as jnp
from jax import lax
from jax.experimental import pallas as pl
from jax.experimental.pallas import tpu as pltpu


def _sublane_packing(dtype):
    itemsize = jnp.dtype(dtype).itemsize
    return {4: 8, 2: 16, 1: 32}.get(itemsize, 8)


def _vmem_capacity_bytes():
    try:
        cap = getattr(pltpu.get_tpu_info(), "vmem_capacity_bytes", None)
        if cap:
            return int(cap)
    except Exception:
        pass
    return 128 * 1024 * 1024


def _block_params():
    """(target block bytes, vmem_limit_bytes), chosen per TPU generation."""
    cap = _vmem_capacity_bytes()
    if cap <= 96 * 1024 * 1024:
        # v7x-class: 64 MiB VMEM / ~3.2 TB/s HBM.  8 MiB blocks amortize the
        # fixed per-grid-step cost; 2x(in)+2x(out) buffers = 32 MiB live,
        # 48 MiB limit leaves headroom inside the 64 MiB budget.
        return 8 * 1024 * 1024, 48 * 1024 * 1024
    # v5e / v6e (128 MiB physical): 4 MiB blocks are already ~85% of the HBM
    # roofline; explicit 32 MiB limit avoids v5e's 16 MiB scoped default.
    return 4 * 1024 * 1024, 32 * 1024 * 1024


def _choose_width(numel):
    """Lane-dense width.  Returns (width, padded_numel)."""
    for w in (512, 256, 128):
        if numel % w == 0:
            return w, numel
    # numel not a multiple of 128: pad the flat tensor (kept lane-dense) rather
    # than falling back to a lane-sparse last-dim view with masked vst stores.
    w = 128
    return w, ((numel + w - 1) // w) * w


def _choose_row_tile(rows, width, dtype, target_bytes):
    packing = _sublane_packing(dtype)
    itemsize = jnp.dtype(dtype).itemsize
    if rows <= packing:
        return rows                                   # single block == full dim
    t = max(packing, target_bytes // (width * itemsize))
    t = (t // packing) * packing
    t = max(packing, min(t, (rows // packing) * packing))
    # Prefer a divisor of rows near the target so the ragged-tile handling
    # (masking in the reduction) compiles away entirely.
    d = t
    while d >= packing:
        if rows % d == 0:
            if 2 * d >= t:        # accept only if it doesn't shrink blocks >2x
                return d
            break
        d -= packing
    return t


# ---------------------------------------------------------------------------
# Kernel 1: abs-sum reduction (lazy step-size init  2*mean|x|/sqrt(high)).
# Per-block jnp.sum accumulated into a scalar SMEM scratch (XLU reduce is free
# filler under an HBM-bound stream); no block-sized VMEM accumulator.
# ---------------------------------------------------------------------------
def _abs_sum_kernel(x_ref, s_ref, acc_ref, *, valid_rows, row_tile, need_mask):
    i = pl.program_id(0)
    last = pl.num_programs(0) - 1

    @pl.when(i == 0)
    def _():
        acc_ref[0] = 0.0

    a = jnp.abs(x_ref[...].astype(jnp.float32))
    if need_mask:
        # Ragged last tile: rows past the true end hold unspecified data from
        # the clipped boundary DMA.  Mask only on the last grid step so the
        # steady-state blocks stay mask-free.
        @pl.when(i != last)
        def _():
            acc_ref[0] += jnp.sum(a)

        @pl.when(i == last)
        def _():
            row_ids = i * row_tile + lax.broadcasted_iota(jnp.int32, a.shape, 0)
            acc_ref[0] += jnp.sum(jnp.where(row_ids < valid_rows, a, 0.0))
    else:
        acc_ref[0] += jnp.sum(a)

    @pl.when(i == last)
    def _():
        s_ref[0] = acc_ref[0]


def _abs_sum(x2d, row_tile, vmem_limit):
    rows, width = x2d.shape
    grid = (pl.cdiv(rows, row_tile),)
    need_mask = (rows % row_tile) != 0
    kern = functools.partial(_abs_sum_kernel, valid_rows=rows,
                             row_tile=row_tile, need_mask=need_mask)
    return pl.pallas_call(
        kern,
        out_shape=jax.ShapeDtypeStruct((1,), jnp.float32),
        grid_spec=pltpu.PrefetchScalarGridSpec(
            num_scalar_prefetch=0,
            grid=grid,
            in_specs=[pl.BlockSpec((row_tile, width), lambda i: (i, 0))],
            out_specs=pl.BlockSpec(memory_space=pltpu.MemorySpace.SMEM),
            scratch_shapes=[pltpu.SMEM((1,), jnp.float32)],
        ),
        compiler_params=pltpu.CompilerParams(
            dimension_semantics=("arbitrary",),     # carries the SMEM accumulator
            vmem_limit_bytes=vmem_limit),
    )(x2d)


# ---------------------------------------------------------------------------
# Kernel 2: elementwise LSQ quantization hot path.
# ---------------------------------------------------------------------------
def _quant_kernel(step_ref, x_ref, o_ref, *, low, high, binary):
    step = step_ref[0]
    inv_step = 1.0 / step          # scalar reciprocal hoisted out of the tile op
    idx = x_ref[...].astype(jnp.float32) * inv_step
    if binary:
        idx = jnp.sign(idx)                        # sign_pass forward
    else:
        idx = jnp.round(jnp.clip(idx, low, high))  # round_pass forward
    o_ref[...] = (idx * step).astype(o_ref.dtype)


def _quantize2d(x2d, step, *, row_tile, vmem_limit, low, high, binary):
    rows, width = x2d.shape
    grid = (pl.cdiv(rows, row_tile),)
    kern = functools.partial(_quant_kernel, low=low, high=high, binary=binary)
    return pl.pallas_call(
        kern,
        out_shape=jax.ShapeDtypeStruct((rows, width), x2d.dtype),
        grid_spec=pltpu.PrefetchScalarGridSpec(
            num_scalar_prefetch=1,
            grid=grid,
            in_specs=[pl.BlockSpec((row_tile, width),
                                   lambda i, step_ref: (i, 0))],
            out_specs=pl.BlockSpec((row_tile, width),
                                   lambda i, step_ref: (i, 0)),
        ),
        compiler_params=pltpu.CompilerParams(
            dimension_semantics=("parallel",),       # no carry -> megacore on v7x
            vmem_limit_bytes=vmem_limit),
    )(step, x2d)


# ---------------------------------------------------------------------------
# Module wrapper (parameter setup / reshapes stay in plain JAX).
# ---------------------------------------------------------------------------
class LSQWeightQuantizer:
    def __init__(self, w_bits, mean_scale, out_c, binary=False, ternary=True,
                 per_channel=True):
        self.w_bits = w_bits
        self.mean_scale = mean_scale
        self.binary = binary
        self.per_channel = per_channel
        self.out_c = out_c
        if binary:
            self.wlow, self.whigh = -1.0, 1.0
        elif ternary:
            # NB: reference writes `-1 ** (w_bits - 1)` which is -(1**k) == -1.0
            self.wlow = float(-1 ** (self.w_bits - 1))
            self.whigh = float(2 ** (self.w_bits - 1) - 1)
        else:
            self.wlow = float(-(2 ** (self.w_bits - 1)))
            self.whigh = float(2 ** (self.w_bits - 1) - 1)
        # nn.Parameter(torch.tensor(1.0)) -> deterministic init
        self.w_step_size = jnp.float32(1.0)
        self.initialized_alpha = False
        self._block_bytes_override = None   # test hook: force small tiles

    def __call__(self, x):
        C = x.shape[-1]
        N = x.size
        R = N // C

        target_bytes, vmem_limit = _block_params()
        if self._block_bytes_override is not None:
            target_bytes = self._block_bytes_override

        # Lane-dense internal view (free: quantization is elementwise with a
        # single per-tensor step); zero-pad the flat tensor if numel % 128 != 0.
        W, Np = _choose_width(N)
        xf = x.reshape(-1)
        if Np != N:
            xf = jnp.pad(xf, (0, Np - N))
        x2d = xf.reshape(Np // W, W)
        row_tile = _choose_row_tile(x2d.shape[0], W, x2d.dtype, target_bytes)

        if not self.initialized_alpha:
            if self.per_channel:
                # init_val = 2 * mean(|x|) / whigh ** 0.5 (per_channel, non-3D
                # branch); padded zeros contribute 0 so divide by the true N.
                abs_sum = _abs_sum(x2d, row_tile, vmem_limit)[0]
                self.w_step_size = (2.0 * abs_sum / N) / (self.whigh ** 0.5)
            self.initialized_alpha = True

        if self.mean_scale:
            # quantize(..., means=True): index = 0 -> round(clamp(0)) * step == 0
            # TODO(synk): STE gradient path of the zero branch is not modeled.
            return jnp.zeros((R, C), x.dtype)

        step = jnp.asarray(self.w_step_size, jnp.float32).reshape(1)
        out = _quantize2d(x2d, step, row_tile=row_tile, vmem_limit=vmem_limit,
                          low=self.wlow, high=self.whigh, binary=self.binary)
        if Np != N:
            out = out.reshape(-1)[:N]
        # Module returns the flattened 2-D view, like x.view(-1, x.size(-1)).
        return out.reshape(R, C)


if __name__ == "__main__":
    key = jax.random.PRNGKey(0)

    # --- test 1: linear-style weight (out_features, in_features) = (32, 128) ---
    x = jax.random.normal(key, (32, 128), dtype=jnp.float32)
    quantizer = LSQWeightQuantizer(w_bits=2, mean_scale=False, out_c=32)
    out = quantizer(x)
    jax.block_until_ready(out)

    step_expected = 2.0 * jnp.mean(jnp.abs(x)) / (quantizer.whigh ** 0.5)
    assert jnp.allclose(quantizer.w_step_size, step_expected, rtol=1e-5), "step mismatch"
    step = quantizer.w_step_size
    ref = jnp.round(jnp.clip(x.reshape(-1, 128) / step,
                             quantizer.wlow, quantizer.whigh)) * step
    assert out.shape == (32, 128)
    assert jnp.allclose(out, ref, atol=1e-5), "quantized values mismatch"

    # --- test 2: conv-style weight (O, I, kH, kW) = (8, 4, 4, 4) -------------
    w = jax.random.normal(jax.random.PRNGKey(0), (8, 4, 4, 4), dtype=jnp.float32)
    quantizer2 = LSQWeightQuantizer(w_bits=2, mean_scale=False, out_c=8)
    out2 = quantizer2(w)
    jax.block_until_ready(out2)

    step2_expected = 2.0 * jnp.mean(jnp.abs(w)) / (quantizer2.whigh ** 0.5)
    assert jnp.allclose(quantizer2.w_step_size, step2_expected, rtol=1e-5), "conv step mismatch"
    step2 = quantizer2.w_step_size
    ref2 = jnp.round(jnp.clip(w.reshape(-1, 4) / step2,
                              quantizer2.wlow, quantizer2.whigh)) * step2
    assert out2.shape == (8 * 4 * 4, 4)
    assert jnp.allclose(out2, ref2, atol=1e-5), "conv quantized values mismatch"

    # --- test 3: odd conv weight (3,3,3,3) -> numel 81, exercises pad path ---
    w3 = jax.random.normal(jax.random.PRNGKey(0), (3, 3, 3, 3), dtype=jnp.float32)
    quantizer3 = LSQWeightQuantizer(w_bits=2, mean_scale=False, out_c=3)
    out3 = quantizer3(w3)
    jax.block_until_ready(out3)
    step3_expected = 2.0 * jnp.mean(jnp.abs(w3)) / (quantizer3.whigh ** 0.5)
    assert jnp.allclose(quantizer3.w_step_size, step3_expected, rtol=1e-5), "pad step mismatch"
    step3 = quantizer3.w_step_size
    ref3 = jnp.round(jnp.clip(w3.reshape(-1, 3) / step3,
                              quantizer3.wlow, quantizer3.whigh)) * step3
    assert out3.shape == (27, 3)
    assert jnp.allclose(out3, ref3, atol=1e-5), "pad quantized values mismatch"

    # --- test 4: multi-block grid with ragged last tile (forced tiny tiles) ---
    w4 = jax.random.normal(jax.random.PRNGKey(0), (96, 160), dtype=jnp.float32)
    quantizer4 = LSQWeightQuantizer(w_bits=2, mean_scale=False, out_c=96)
    quantizer4._block_bytes_override = 16 * 1024   # rows=30, tile=8 -> ragged tail
    out4 = quantizer4(w4)
    jax.block_until_ready(out4)
    step4_expected = 2.0 * jnp.mean(jnp.abs(w4)) / (quantizer4.whigh ** 0.5)
    assert jnp.allclose(quantizer4.w_step_size, step4_expected, rtol=1e-5), "ragged step mismatch"
    step4 = quantizer4.w_step_size
    ref4 = jnp.round(jnp.clip(w4 / step4, quantizer4.wlow, quantizer4.whigh)) * step4
    assert out4.shape == (96, 160)
    assert jnp.allclose(out4, ref4, atol=1e-5), "ragged quantized values mismatch"

    # --- test 5: binary (sign) path ------------------------------------------
    w5 = jax.random.normal(jax.random.PRNGKey(0), (16, 128), dtype=jnp.float32)
    quantizer5 = LSQWeightQuantizer(w_bits=2, mean_scale=False, out_c=16, binary=True)
    out5 = quantizer5(w5)
    jax.block_until_ready(out5)
    step5 = quantizer5.w_step_size
    ref5 = jnp.sign(w5 / step5) * step5
    assert out5.shape == (16, 128)
    assert jnp.allclose(out5, ref5, atol=1e-5), "binary quantized values mismatch"

    print("KERNEL_OK")
</pallas_src>

<mosaic_0001>
module attributes {stable_mosaic.version = 11 : i64} {
  func.func @_abs_sum_kernel(%arg0: i32, %arg1: memref<8x512xf32, #tpu.memory_space<vmem>>, %arg2: memref<1xf32, #tpu.memory_space<smem>>, %arg3: memref<1xf32, #tpu.memory_space<smem>>) attributes {dimension_semantics = [#tpu.dimension_semantics<arbitrary>], iteration_bounds = array<i64: 1>, scalar_prefetch = 0 : i64, scratch_operands = 1 : i64, tpu.core_type = #tpu.core_type<tc>, window_params = [{transform_indices = @transform_0, window_bounds = array<i64: 8, 512>}, {transform_indices = @transform_1, window_bounds = array<i64: 1>}]} {
    %c0_i32 = arith.constant 0 : i32
    %0 = arith.cmpi eq, %arg0, %c0_i32 : i32
    %1 = arith.extui %0 : i1 to i32
    %c0_i32_0 = arith.constant 0 : i32
    %2 = arith.cmpi ne, %1, %c0_i32_0 : i32
    scf.if %2 {
      %cst_6 = arith.constant 0.000000e+00 : f32
      %c0_7 = arith.constant 0 : index
      %15 = memref.load %arg3[%c0_7] : memref<1xf32, #tpu.memory_space<smem>>
      memref.store %cst_6, %arg3[%c0_7] : memref<1xf32, #tpu.memory_space<smem>>
    } else {
    }
    %c0 = arith.constant 0 : index
    %c0_1 = arith.constant 0 : index
    %3 = vector.load %arg1[%c0, %c0_1] : memref<8x512xf32, #tpu.memory_space<vmem>>, vector<8x512xf32>
    %4 = math.absf %3 : vector<8x512xf32>
    %c0_2 = arith.constant 0 : index
    %5 = memref.load %arg3[%c0_2] : memref<1xf32, #tpu.memory_space<smem>>
    %6 = vector.shape_cast %4 : vector<8x512xf32> to vector<1x8x512xf32>
    %cst = arith.constant dense<0.000000e+00> : vector<1xf32>
    %7 = vector.multi_reduction <add>, %6, %cst [1, 2] : vector<1x8x512xf32> to vector<1xf32>
    %8 = vector.shape_cast %7 : vector<1xf32> to vector<1x1x1xf32>
    %9 = vector.extract %8[0, 0, 0] : f32 from vector<1x1x1xf32>
    %10 = arith.addf %5, %9 : f32
    %c0_3 = arith.constant 0 : index
    %11 = memref.load %arg3[%c0_3] : memref<1xf32, #tpu.memory_space<smem>>
    memref.store %10, %arg3[%c0_3] : memref<1xf32, #tpu.memory_space<smem>>
    %c0_i32_4 = arith.constant 0 : i32
    %12 = arith.cmpi eq, %arg0, %c0_i32_4 : i32
    %13 = arith.extui %12 : i1 to i32
    %c0_i32_5 = arith.constant 0 : i32
    %14 = arith.cmpi ne, %13, %c0_i32_5 : i32
    scf.if %14 {
      %c0_6 = arith.constant 0 : index
      %15 = memref.load %arg3[%c0_6] : memref<1xf32, #tpu.memory_space<smem>>
      %c0_7 = arith.constant 0 : index
      %16 = memref.load %arg2[%c0_7] : memref<1xf32, #tpu.memory_space<smem>>
      memref.store %15, %arg2[%c0_7] : memref<1xf32, #tpu.memory_space<smem>>
    } else {
    }
    return
  }
  func.func @transform_0(%arg0: i32) -> (i32, i32) {
    %c0_i32 = arith.constant 0 : i32
    %c0_i32_0 = arith.constant 0 : i32
    return %arg0, %c0_i32 : i32, i32
  }
  func.func @transform_1(%arg0: i32) -> i32 {
    %c0_i32 = arith.constant 0 : i32
    %c0_i32_0 = arith.constant 0 : i32
    return %c0_i32 : i32
  }
}

</mosaic_0001>

<llo_original>
// kernel: tpu_custom_call.1
$region0: #{tpu_custom_call.1}
  #allocation0 [shape = 'u32[]', space=smem, size = 0x4, offset = 0x4, fixed_abs, tag = 'smem constant byte address 0x4 - core index']
  #allocation1 [shape = 'u32[144,128]{1,0:T(1,128)}', space=vmem, size = 0x12000, scoped, tag = 'internal scratch']
  #allocation2 [shape = 'f32[1]{0:T(128)}', space=smem, size = 0x200, scoped, tag = 'scratch operand']
  %s0 = inlined_call_operand.hbm [shape: f32[8,512], index: 0, kind: input, shape index: {}]
  %s1 = inlined_call_operand.hbm [shape: f32[1], index: 1, kind: output, shape index: {}]
  %s2 = sld [smem:[#allocation0]]
  $region26: #{tpu_custom_call.1} parent=0
    _
  %s4 = ssub.s32 1, %s2
  %s5 = scalar_select 0, %s4, %s2
  $region1: #{tpu_custom_call.1} parent=0
    #allocation3 [shape = 'u8[16384]{0}', space=vmem, size = 0x4000, scoped, tag = 'input window, operand 0, single buffered']
    #allocation4 [shape = 's32[1]{0}', space=sflag, size = 0x4, scoped, tag = 'scoped memory for tpu_custom_call.1']
    #allocation5 [shape = 's32[1]{0}', space=sflag, size = 0x4, scoped, tag = 'scoped memory for tpu_custom_call.1']
    #allocation6 [shape = 'u8[512]{0}', space=smem, size = 0x200, scoped, tag = 'output window, operand 0, single buffered']
    %6 = vsyncpa [#allocation4], 0
    %7 = vsyncpa [#allocation5], 0
    // Predicated region
    $region2: #{tpu_custom_call.1} parent=1 // pred_check
      _
    $region3: #{tpu_custom_call.1} parent=1 // pred_check_branch
      %9 = sbr.rel (0) target = $region5
    $region4: #{tpu_custom_call.1} parent=1 // pred_region
      %s11 = ssub.s32 512, 512
      %12 = vsyncadd [#allocation4], %s11
      %s14 = sshll.u32 [#allocation3], 4
      %s15 = int_to_ptr.vmem [resolvable:$true] %s14
      %17 = dma.hbm_to_vmem [thread:$0]  %s0, 512, %s15, [#allocation4]
    $region5: #{tpu_custom_call.1} parent=1 // pred_fallthru
      _
    // Predicated region
    $region6: #{tpu_custom_call.1} parent=1 // pred_check
      _
    $region7: #{tpu_custom_call.1} parent=1 // pred_check_branch
      %19 = sbr.rel (0) target = $region9
    $region8: #{tpu_custom_call.1} parent=1 // pred_region
      %20 = dma.done [#allocation4], 512
    $region9: #{tpu_custom_call.1} parent=1 // pred_fallthru
      _
    %p21 = scmp.eq.s32.totalorder 0, 0
    // Predicated region
    $region10: #{tpu_custom_call.1} parent=1 // pred_check
      %p22 = pneg %p21
    $region11: #{tpu_custom_call.1} parent=1 // pred_check_branch
      %24 = sbr.rel (%p22) target = $region13
    $region12: #{tpu_custom_call.1} parent=1 // pred_region
      %s25 = scalar_lea.smem [#allocation2], 0
      %26 = sst [smem:[%s25]] 0.0
    $region13: #{tpu_custom_call.1} parent=1 // pred_fallthru
      _
    %v27 = vld [vmem:[#allocation3] sm:$0xff]
    %v28 = vld [vmem:[#allocation3 + $0x8] sm:$0xff]
    %v29 = vld [vmem:[#allocation3 + $0x10] sm:$0xff]
    %v30 = vld [vmem:[#allocation3 + $0x18] sm:$0xff]
    %v31 = vand.u32 2147483647, %v27
    %v32 = vand.u32 2147483647, %v28
    %v33 = vand.u32 2147483647, %v29
    %v34 = vand.u32 2147483647, %v30
    %s35 = sld [smem:[#allocation2]]
    %v36 = vadd.f32 %v31, %v32
    %v37 = vadd.f32 %v36, %v33
    %v38 = vadd.f32 %v37, %v34
    %39 = vadd.xlane.f32.xlu0 %v38
    %v40 = vpop.xlane.xlu0 %39
    %v41 = vrot.slane %v40, 4
    %v42 = vadd.f32 %v40, %v41
    %v43 = vrot.slane %v42, 2
    %v44 = vadd.f32 %v42, %v43
    %v45 = vrot.slane %v44, 1
    %v46 = vadd.f32 %v44, %v45
    %s47 = vtos %v46
    %s48 = sadd.f32 %s35, %s47
    %s49 = scalar_lea.smem [#allocation2], 0
    %50 = sst [smem:[%s49]] %s48
    // Predicated region
    $region14: #{tpu_custom_call.1} parent=1 // pred_check
      %p51 = pneg %p21
    $region15: #{tpu_custom_call.1} parent=1 // pred_check_branch
      %53 = sbr.rel (%p51) target = $region17
    $region16: #{tpu_custom_call.1} parent=1 // pred_region
      %s54 = sld [smem:[#allocation2]]
      %s55 = scalar_lea.smem [#allocation6], 0
      %56 = sst [smem:[%s55]] %s54
    $region17: #{tpu_custom_call.1} parent=1 // pred_fallthru
      _
    // Predicated region
    $region18: #{tpu_custom_call.1} parent=1 // pred_check
      _
    $region19: #{tpu_custom_call.1} parent=1 // pred_check_branch
      %58 = sbr.rel (0) target = $region21
    $region20: #{tpu_custom_call.1} parent=1 // pred_region
      %s60 = ssub.s32 16, 16
      %61 = vsyncadd [#allocation5], %s60
      %64 = dma.smem_to_hbm [#allocation6], 16, %s1, [#allocation5]
    $region21: #{tpu_custom_call.1} parent=1 // pred_fallthru
      _
    // Predicated region
    $region22: #{tpu_custom_call.1} parent=1 // pred_check
      _
    $region23: #{tpu_custom_call.1} parent=1 // pred_check_branch
      %66 = sbr.rel (0) target = $region25
    $region24: #{tpu_custom_call.1} parent=1 // pred_region
      %67 = dma.done [#allocation5], 16
    $region25: #{tpu_custom_call.1} parent=1 // pred_fallthru
      _
    %68 = sfence
    %69 = vsyncpa [#allocation4], 1
    %70 = vsyncpa [#allocation5], 1

</llo_original>
